<compile_context>
chip_gen: v7x
topology: tpu7x:2x2x1
jax: 0.10.0
libtpu: 0.0.40
codegen_flags: <defaults>
</compile_context>

<pallas_src>
import re

import jax
import jax.numpy as jnp
from jax.experimental import pallas as pl
from jax.experimental.pallas import tpu as pltpu


# --------------------------------------------------------------------------- #
# Hardware query (best effort; conservative fallbacks if unavailable)
# --------------------------------------------------------------------------- #
def _tpu_params():
    vmem_capacity = 64 << 20          # conservative: v7x per-TC VMEM
    num_tc = 1                        # v5e / v6e
    generation = None
    try:
        info = pltpu.get_tpu_info()
        cap = int(getattr(info, "vmem_capacity_bytes", 0) or 0)
        if cap > 0:
            vmem_capacity = cap
        name = str(getattr(info, "chip_version", "") or getattr(info, "name", ""))
        m = re.search(r"(\d+)", name)
        if m:
            generation = int(m.group(1))
        cores = getattr(info, "num_cores", None) or getattr(info, "tensorcore_count", None)
        if cores:
            num_tc = max(1, min(2, int(cores)))
        elif generation is not None and generation >= 7:
            num_tc = 2
    except Exception:
        pass
    return vmem_capacity, num_tc, generation


# --------------------------------------------------------------------------- #
# Kernel
# --------------------------------------------------------------------------- #
def _make_se_kernel(inv_hw, scale_in_native_dtype):
    def kernel(x_ref, w1t_ref, b1_ref, w2t_ref, b2_ref, o_ref):
        # x_ref  : (Bt, C, HW)        o_ref : (Bt, C, HW)
        # w1t_ref: (C, hidden)        b1_ref: (1, hidden)
        # w2t_ref: (hidden, C)        b2_ref: (1, C)

        # squeeze: global average pool (streamed f32 reduce; x_ref consumed once)
        s = jnp.sum(x_ref[...].astype(jnp.float32), axis=2) * inv_hw      # (Bt, C)

        # excitation: fc1 + ReLU, fc2 + sigmoid (tiny matmuls, f32 accumulate)
        h = jnp.dot(s, w1t_ref[...].astype(jnp.float32),
                    preferred_element_type=jnp.float32) + b1_ref[...].astype(jnp.float32)
        h = jnp.maximum(h, 0.0)                                            # (Bt, hidden)
        z = jnp.dot(h, w2t_ref[...].astype(jnp.float32),
                    preferred_element_type=jnp.float32) + b2_ref[...].astype(jnp.float32)
        z = jax.nn.sigmoid(z)                                              # (Bt, C)

        # scale: per-(image, channel) gate broadcast over HW
        if scale_in_native_dtype:
            # bf16 VPU path (v6e/v7x): packed multiply, no per-element f32 convert
            o_ref[...] = x_ref[...] * z.astype(o_ref.dtype)[:, :, None]
        else:
            o_ref[...] = (x_ref[...].astype(jnp.float32) * z[:, :, None]).astype(o_ref.dtype)

    return kernel


# --------------------------------------------------------------------------- #
# Wrapper
# --------------------------------------------------------------------------- #
def squeeze_excitation(x, w1, b1, w2, b2, *, target_block_bytes=None, donate_x=False):
    """x: (B, C, H, W); w1: (hidden, C); b1: (hidden,); w2: (C, hidden); b2: (C,)."""
    B, C, H, W = x.shape
    hidden = w1.shape[0]
    HW = H * W
    itemsize = jnp.dtype(x.dtype).itemsize

    vmem_capacity, num_tc, generation = _tpu_params()

    if target_block_bytes is None:
        # (2 in + 2 out) buffers + a possible f32 temp stay well under capacity:
        # ~8 MiB blocks on v7x (64 MiB VMEM), ~16 MiB on v5e/v6e (128 MiB VMEM).
        target_block_bytes = max(1 << 20, vmem_capacity // 8)

    bytes_per_image = C * HW * itemsize
    f32_image_bytes = C * HW * 4
    weight_bytes = int((w1.size + b1.size + w2.size + b2.size)
                       * jnp.dtype(w1.dtype).itemsize)

    # single image must fit one block (see TODO at top of file)
    assert 4 * bytes_per_image + f32_image_bytes + 2 * weight_bytes + (2 << 20) <= vmem_capacity, (
        "SqueezeExcitation: single image does not fit VMEM; needs an HW/C tiling path")

    # ---- batch tile Bt -------------------------------------------------------
    bt = max(1, min(B, target_block_bytes // bytes_per_image))
    if num_tc > 1 and B > 1:
        # megacore: want an even number of (near-)balanced grid steps
        steps = pl.cdiv(B, bt)
        if steps % 2 == 1:
            cand = pl.cdiv(B, steps + 1)
            if cand >= 1 and pl.cdiv(B, cand) % 2 == 0:
                bt = cand
    grid_b = pl.cdiv(B, bt)
    block_bytes = bt * bytes_per_image

    # ---- VMEM budget (in/out double buffers + f32 temp headroom + weights) --
    f32_block_bytes = bt * C * HW * 4
    vmem_needed = 4 * block_bytes + f32_block_bytes + 4 * weight_bytes + (2 << 20)
    vmem_limit = int(min(max(vmem_needed, 16 << 20), (vmem_capacity * 7) // 8))

    # bf16 multiply only on chips with a bf16 VPU (v6e+); f32 path otherwise
    scale_in_native_dtype = bool(
        x.dtype == jnp.bfloat16 and generation is not None and generation >= 6)

    # ---- free (contiguous) reshapes / tiny weight transposes ----------------
    x_flat = x.reshape(B, C, HW)
    w1t = w1.T                       # (C, hidden)
    w2t = w2.T                       # (hidden, C)
    b1r = b1.reshape(1, hidden)
    b2r = b2.reshape(1, C)

    x_block = (bt, C, HW)
    kernel = _make_se_kernel(float(1.0 / HW), scale_in_native_dtype)

    cost = pl.CostEstimate(
        flops=int(B * C * HW                      # pool sum
                  + B * C                         # pool divide
                  + 4 * B * C * hidden            # two matmuls
                  + B * (2 * hidden + C)          # biases + relu
                  + B * C * HW),                  # scale multiply
        transcendentals=int(B * C),
        bytes_accessed=int(2 * B * C * HW * itemsize + weight_bytes),
    )

    out_flat = pl.pallas_call(
        kernel,
        out_shape=jax.ShapeDtypeStruct((B, C, HW), x.dtype),
        grid_spec=pltpu.PrefetchScalarGridSpec(
            num_scalar_prefetch=0,
            grid=(grid_b,),
            in_specs=[
                pl.BlockSpec(x_block, lambda b: (b, 0, 0)),
                pl.BlockSpec((C, hidden), lambda b: (0, 0)),
                pl.BlockSpec((1, hidden), lambda b: (0, 0)),
                pl.BlockSpec((hidden, C), lambda b: (0, 0)),
                pl.BlockSpec((1, C), lambda b: (0, 0)),
            ],
            out_specs=pl.BlockSpec(x_block, lambda b: (b, 0, 0)),
        ),
        compiler_params=pltpu.CompilerParams(
            dimension_semantics=("parallel",),
            vmem_limit_bytes=vmem_limit,
        ),
        cost_estimate=cost,
        input_output_aliases=({0: 0} if donate_x else {}),
    )(x_flat, w1t, b1r, w2t, b2r)

    return out_flat.reshape(B, C, H, W)


# --------------------------------------------------------------------------- #
# Reference + demo
# --------------------------------------------------------------------------- #
def _reference(x, w1, b1, w2, b2):
    xf = x.astype(jnp.float32)
    s = jnp.mean(xf, axis=(2, 3))                               # (B, C)
    h = jax.nn.relu(s @ w1.T + b1)                              # (B, hidden)
    z = jax.nn.sigmoid(h @ w2.T + b2)                           # (B, C)
    return xf * z[:, :, None, None]


if __name__ == "__main__":
    B, C, H, W = 4, 16, 16, 16
    se_ratio = 0.25
    hidden = max(1, int(C * se_ratio))

    key = jax.random.PRNGKey(0)
    kx, k1, k2, k3, k4 = jax.random.split(key, 5)

    x = jax.random.normal(kx, (B, C, H, W), dtype=jnp.float32)
    # nn.Conv2d(channels, hidden, 1) weight: (hidden, C, 1, 1) -> (hidden, C)
    w1 = jax.random.normal(k1, (hidden, C), dtype=jnp.float32) * 0.1
    b1 = jax.random.normal(k2, (hidden,), dtype=jnp.float32) * 0.1
    # nn.Conv2d(hidden, channels, 1) weight: (C, hidden, 1, 1) -> (C, hidden)
    w2 = jax.random.normal(k3, (C, hidden), dtype=jnp.float32) * 0.1
    b2 = jax.random.normal(k4, (C,), dtype=jnp.float32) * 0.1

    # f32 path
    out = squeeze_excitation(x, w1, b1, w2, b2)
    jax.block_until_ready(out)
    ref = _reference(x, w1, b1, w2, b2)
    assert jnp.allclose(out, ref, atol=1e-4, rtol=1e-4), "f32 mismatch vs reference"

    # bf16 path (exercises the native-dtype scale selection; f32 fallback on v5e)
    x_bf16 = x.astype(jnp.bfloat16)
    out_bf16 = squeeze_excitation(x_bf16, w1, b1, w2, b2)
    jax.block_until_ready(out_bf16)
    ref_bf16 = _reference(x_bf16, w1, b1, w2, b2)
    assert jnp.allclose(out_bf16.astype(jnp.float32), ref_bf16, atol=3e-2, rtol=3e-2), \
        "bf16 mismatch vs reference"

    print("KERNEL_OK")
</pallas_src>

<mosaic_0001>
module attributes {stable_mosaic.version = 11 : i64} {
  func.func @kernel(%arg0: i32, %arg1: memref<4x16x256xf32, #tpu.memory_space<vmem>>, %arg2: memref<16x4xf32, #tpu.memory_space<vmem>>, %arg3: memref<1x4xf32, #tpu.memory_space<vmem>>, %arg4: memref<4x16xf32, #tpu.memory_space<vmem>>, %arg5: memref<1x16xf32, #tpu.memory_space<vmem>>, %arg6: memref<4x16x256xf32, #tpu.memory_space<vmem>>) attributes {dimension_semantics = [#tpu.dimension_semantics<parallel>], iteration_bounds = array<i64: 1>, scalar_prefetch = 0 : i64, scratch_operands = 0 : i64, tpu.core_type = #tpu.core_type<tc>, window_params = [{transform_indices = @transform_0, window_bounds = array<i64: 4, 16, 256>}, {pipeline_mode = #tpu.pipeline_mode<synchronous>, transform_indices = @transform_1, window_bounds = array<i64: 16, 4>}, {pipeline_mode = #tpu.pipeline_mode<synchronous>, transform_indices = @transform_2, window_bounds = array<i64: 1, 4>}, {pipeline_mode = #tpu.pipeline_mode<synchronous>, transform_indices = @transform_3, window_bounds = array<i64: 4, 16>}, {pipeline_mode = #tpu.pipeline_mode<synchronous>, transform_indices = @transform_4, window_bounds = array<i64: 1, 16>}, {transform_indices = @transform_5, window_bounds = array<i64: 4, 16, 256>}]} {
    %c0 = arith.constant 0 : index
    %c0_0 = arith.constant 0 : index
    %c0_1 = arith.constant 0 : index
    %0 = vector.load %arg1[%c0, %c0_0, %c0_1] : memref<4x16x256xf32, #tpu.memory_space<vmem>>, vector<4x16x256xf32>
    %cst = arith.constant dense<0.000000e+00> : vector<4x16xf32>
    %1 = vector.multi_reduction <add>, %0, %cst [2] : vector<4x16x256xf32> to vector<4x16xf32>
    %cst_2 = arith.constant 3.906250e-03 : f32
    %2 = vector.broadcast %cst_2 : f32 to vector<4x16xf32>
    %3 = arith.mulf %1, %2 : vector<4x16xf32>
    %c0_3 = arith.constant 0 : index
    %c0_4 = arith.constant 0 : index
    %4 = vector.load %arg2[%c0_3, %c0_4] : memref<16x4xf32, #tpu.memory_space<vmem>>, vector<16x4xf32>
    %cst_5 = arith.constant dense<0.000000e+00> : vector<4x4xf32>
    %5 = tpu.matmul %3, %4, %cst_5 {dimension_numbers = #tpu.dot_dimension_numbers<[1], [0], [0], [1], [0, 0, 1, 1], [], []>} : vector<4x16xf32>, vector<16x4xf32>, vector<4x4xf32> -> vector<4x4xf32>
    %c0_6 = arith.constant 0 : index
    %c0_7 = arith.constant 0 : index
    %6 = vector.load %arg3[%c0_6, %c0_7] : memref<1x4xf32, #tpu.memory_space<vmem>>, vector<1x4xf32>
    %7 = vector.broadcast %6 : vector<1x4xf32> to vector<4x4xf32>
    %8 = arith.addf %5, %7 : vector<4x4xf32>
    %cst_8 = arith.constant 0.000000e+00 : f32
    %9 = vector.broadcast %cst_8 : f32 to vector<4x4xf32>
    %10 = arith.maximumf %8, %9 : vector<4x4xf32>
    %c0_9 = arith.constant 0 : index
    %c0_10 = arith.constant 0 : index
    %11 = vector.load %arg4[%c0_9, %c0_10] : memref<4x16xf32, #tpu.memory_space<vmem>>, vector<4x16xf32>
    %cst_11 = arith.constant dense<0.000000e+00> : vector<4x16xf32>
    %12 = tpu.matmul %10, %11, %cst_11 {dimension_numbers = #tpu.dot_dimension_numbers<[1], [0], [0], [1], [0, 0, 1, 1], [], []>} : vector<4x4xf32>, vector<4x16xf32>, vector<4x16xf32> -> vector<4x16xf32>
    %c0_12 = arith.constant 0 : index
    %c0_13 = arith.constant 0 : index
    %13 = vector.load %arg5[%c0_12, %c0_13] : memref<1x16xf32, #tpu.memory_space<vmem>>, vector<1x16xf32>
    %14 = vector.broadcast %13 : vector<1x16xf32> to vector<4x16xf32>
    %15 = arith.addf %12, %14 : vector<4x16xf32>
    %16 = arith.negf %15 : vector<4x16xf32>
    %17 = math.exp %16 : vector<4x16xf32>
    %cst_14 = arith.constant 1.000000e+00 : f32
    %18 = vector.broadcast %cst_14 : f32 to vector<4x16xf32>
    %19 = arith.addf %18, %17 : vector<4x16xf32>
    %20 = arith.divf %18, %19 : vector<4x16xf32>
    %c0_15 = arith.constant 0 : index
    %c0_16 = arith.constant 0 : index
    %c0_17 = arith.constant 0 : index
    %21 = vector.load %arg1[%c0_15, %c0_16, %c0_17] : memref<4x16x256xf32, #tpu.memory_space<vmem>>, vector<4x16x256xf32>
    %22 = vector.shape_cast %20 : vector<4x16xf32> to vector<4x16x1xf32>
    %23 = vector.broadcast %22 : vector<4x16x1xf32> to vector<4x16x256xf32>
    %24 = arith.mulf %21, %23 : vector<4x16x256xf32>
    %c0_18 = arith.constant 0 : index
    %c0_19 = arith.constant 0 : index
    %c0_20 = arith.constant 0 : index
    %25 = vector.load %arg6[%c0_18, %c0_19, %c0_20] : memref<4x16x256xf32, #tpu.memory_space<vmem>>, vector<4x16x256xf32>
    tpu.vector_store %arg6[%c0_18, %c0_19, %c0_20], %24 {strides = array<i32>} : memref<4x16x256xf32, #tpu.memory_space<vmem>>, vector<4x16x256xf32>,
    return
  }
  func.func @transform_0(%arg0: i32) -> (i32, i32, i32) {
    %c0_i32 = arith.constant 0 : i32
    %c0_i32_0 = arith.constant 0 : i32
    %c0_i32_1 = arith.constant 0 : i32
    return %arg0, %c0_i32, %c0_i32_0 : i32, i32, i32
  }
  func.func @transform_1(%arg0: i32) -> (i32, i32) {
    %c0_i32 = arith.constant 0 : i32
    %c0_i32_0 = arith.constant 0 : i32
    %c0_i32_1 = arith.constant 0 : i32
    return %c0_i32, %c0_i32_0 : i32, i32
  }
  func.func @transform_2(%arg0: i32) -> (i32, i32) {
    %c0_i32 = arith.constant 0 : i32
    %c0_i32_0 = arith.constant 0 : i32
    %c0_i32_1 = arith.constant 0 : i32
    return %c0_i32, %c0_i32_0 : i32, i32
  }
  func.func @transform_3(%arg0: i32) -> (i32, i32) {
    %c0_i32 = arith.constant 0 : i32
    %c0_i32_0 = arith.constant 0 : i32
    %c0_i32_1 = arith.constant 0 : i32
    return %c0_i32, %c0_i32_0 : i32, i32
  }
  func.func @transform_4(%arg0: i32) -> (i32, i32) {
    %c0_i32 = arith.constant 0 : i32
    %c0_i32_0 = arith.constant 0 : i32
    %c0_i32_1 = arith.constant 0 : i32
    return %c0_i32, %c0_i32_0 : i32, i32
  }
  func.func @transform_5(%arg0: i32) -> (i32, i32, i32) {
    %c0_i32 = arith.constant 0 : i32
    %c0_i32_0 = arith.constant 0 : i32
    %c0_i32_1 = arith.constant 0 : i32
    return %arg0, %c0_i32, %c0_i32_0 : i32, i32, i32
  }
}

</mosaic_0001>

<llo_original>
// kernel: tpu_custom_call.1
$region0: #{tpu_custom_call.1}
  #allocation0 [shape = 'u32[]', space=smem, size = 0x4, offset = 0x4, fixed_abs, tag = 'smem constant byte address 0x4 - core index']
  #allocation1 [shape = 'u32[144,128]{1,0:T(1,128)}', space=vmem, size = 0x12000, scoped, tag = 'internal scratch']
  %s0 = inlined_call_operand.hbm [shape: f32[4,16,256], index: 0, kind: input, shape index: {}]
  %s1 = inlined_call_operand.vmem [shape: f32[16,4], index: 1, kind: input, shape index: {}]
  %s2 = inlined_call_operand.vmem [shape: f32[1,4], index: 2, kind: input, shape index: {}]
  %s3 = inlined_call_operand.vmem [shape: f32[4,16], index: 3, kind: input, shape index: {}]
  %s4 = inlined_call_operand.vmem [shape: f32[1,16], index: 4, kind: input, shape index: {}]
  %s5 = inlined_call_operand.hbm [shape: f32[4,16,256], index: 5, kind: output, shape index: {}]
  %s6 = sld [smem:[#allocation0]]
  $region34: #{tpu_custom_call.1} parent=0
    _
  %s8 = ssub.s32 1, %s6
  %s9 = scalar_select 0, %s8, %s6
  $region1: #{tpu_custom_call.1} parent=0
    #allocation2 [shape = 'u8[65536]{0}', space=vmem, size = 0x10000, scoped, tag = 'input window, operand 0, single buffered']
    #allocation3 [shape = 's32[1]{0}', space=sflag, size = 0x4, scoped, tag = 'scoped memory for tpu_custom_call.1']
    #allocation4 [shape = 's32[1]{0}', space=sflag, size = 0x4, scoped, tag = 'scoped memory for tpu_custom_call.1']
    #allocation5 [shape = 'u8[65536]{0}', space=vmem, size = 0x10000, scoped, tag = 'output window, operand 0, single buffered']
    %10 = vsyncpa [#allocation3], 0
    %11 = vsyncpa [#allocation4], 0
    // Predicated region
    $region2: #{tpu_custom_call.1} parent=1 // pred_check
      _
    $region3: #{tpu_custom_call.1} parent=1 // pred_check_branch
      %13 = sbr.rel (0) target = $region5
    $region4: #{tpu_custom_call.1} parent=1 // pred_region
      %s15 = ssub.s32 2048, 2048
      %16 = vsyncadd [#allocation3], %s15
      %s17 = sshll.u32 [#allocation2], 4
      %s18 = int_to_ptr.vmem [resolvable:$true] %s17
      %23 = dma.hbm_to_vmem [thread:$0]  %s0, 2048, %s18, [#allocation3], 256, 256, 16
    $region5: #{tpu_custom_call.1} parent=1 // pred_fallthru
      _
    // Predicated region
    $region6: #{tpu_custom_call.1} parent=1 // pred_check
      _
    $region7: #{tpu_custom_call.1} parent=1 // pred_check_branch
      %25 = sbr.rel (0) target = $region9
    $region8: #{tpu_custom_call.1} parent=1 // pred_region
      _
    $region9: #{tpu_custom_call.1} parent=1 // pred_fallthru
      _
    // Predicated region
    $region10: #{tpu_custom_call.1} parent=1 // pred_check
      _
    $region11: #{tpu_custom_call.1} parent=1 // pred_check_branch
      %27 = sbr.rel (0) target = $region13
    $region12: #{tpu_custom_call.1} parent=1 // pred_region
      _
    $region13: #{tpu_custom_call.1} parent=1 // pred_fallthru
      _
    // Predicated region
    $region14: #{tpu_custom_call.1} parent=1 // pred_check
      _
    $region15: #{tpu_custom_call.1} parent=1 // pred_check_branch
      %29 = sbr.rel (0) target = $region17
    $region16: #{tpu_custom_call.1} parent=1 // pred_region
      _
    $region17: #{tpu_custom_call.1} parent=1 // pred_fallthru
      _
    // Predicated region
    $region18: #{tpu_custom_call.1} parent=1 // pred_check
      _
    $region19: #{tpu_custom_call.1} parent=1 // pred_check_branch
      %31 = sbr.rel (0) target = $region21
    $region20: #{tpu_custom_call.1} parent=1 // pred_region
      _
    $region21: #{tpu_custom_call.1} parent=1 // pred_fallthru
      _
    // Predicated region
    $region22: #{tpu_custom_call.1} parent=1 // pred_check
      _
    $region23: #{tpu_custom_call.1} parent=1 // pred_check_branch
      %33 = sbr.rel (0) target = $region25
    $region24: #{tpu_custom_call.1} parent=1 // pred_region
      %34 = dma.done [#allocation3], 2048
    $region25: #{tpu_custom_call.1} parent=1 // pred_fallthru
      _
    %v35 = vld [vmem:[#allocation2] sm:$0xff]
    %v36 = vld [vmem:[#allocation2 + $0x8] sm:$0xff]
    %v37 = vld [vmem:[#allocation2 + $0x10] sm:$0xff]
    %v38 = vld [vmem:[#allocation2 + $0x18] sm:$0xff]
    %v39 = vld [vmem:[#allocation2 + $0x20] sm:$0xff]
    %v40 = vld [vmem:[#allocation2 + $0x28] sm:$0xff]
    %v41 = vld [vmem:[#allocation2 + $0x30] sm:$0xff]
    %v42 = vld [vmem:[#allocation2 + $0x38] sm:$0xff]
    %v43 = vld [vmem:[#allocation2 + $0x40] sm:$0xff]
    %v44 = vld [vmem:[#allocation2 + $0x48] sm:$0xff]
    %v45 = vld [vmem:[#allocation2 + $0x50] sm:$0xff]
    %v46 = vld [vmem:[#allocation2 + $0x58] sm:$0xff]
    %v47 = vld [vmem:[#allocation2 + $0x60] sm:$0xff]
    %v48 = vld [vmem:[#allocation2 + $0x68] sm:$0xff]
    %v49 = vld [vmem:[#allocation2 + $0x70] sm:$0xff]
    %v50 = vld [vmem:[#allocation2 + $0x78] sm:$0xff]
    %v51 = vadd.f32 %v35, %v36
    %52 = vadd.xlane.f32.xlu0 %v51
    %v53 = vpop.xlane.xlu0 %52
    %v54 = vadd.f32 %v37, %v38
    %55 = vadd.xlane.f32.xlu0 %v54
    %v56 = vpop.xlane.xlu0 %55
    %v57 = vadd.f32 %v39, %v40
    %58 = vadd.xlane.f32.xlu0 %v57
    %v59 = vpop.xlane.xlu0 %58
    %v60 = vadd.f32 %v41, %v42
    %61 = vadd.xlane.f32.xlu0 %v60
    %v62 = vpop.xlane.xlu0 %61
    %v63 = vadd.f32 %v43, %v44
    %64 = vadd.xlane.f32.xlu0 %v63
    %v65 = vpop.xlane.xlu0 %64
    %v66 = vadd.f32 %v45, %v46
    %67 = vadd.xlane.f32.xlu0 %v66
    %v68 = vpop.xlane.xlu0 %67
    %v69 = vadd.f32 %v47, %v48
    %70 = vadd.xlane.f32.xlu0 %v69
    %v71 = vpop.xlane.xlu0 %70
    %v72 = vadd.f32 %v49, %v50
    %73 = vadd.xlane.f32.xlu0 %v72
    %v74 = vpop.xlane.xlu0 %73
    %v75 = vmul.f32 %v53, 0.00390625
    %v76 = vmul.f32 %v56, 0.00390625
    %v77 = vmul.f32 %v59, 0.00390625
    %v78 = vmul.f32 %v62, 0.00390625
    %v79 = vmul.f32 %v65, 0.00390625
    %v80 = vmul.f32 %v68, 0.00390625
    %v81 = vmul.f32 %v71, 0.00390625
    %v82 = vmul.f32 %v74, 0.00390625
    %v83 = vld [vmem:[%s1] sm:$0xff]
    %v84 = vld [vmem:[%s1 + $0x8] sm:$0xff]
    %v85 = vld [vmem:[%s2] sm:$0x1]
    %v87 = vlaneseq
    %v88 = vshrl.u32 %v87, 7
    %v89 = vsub.s32 0, %v88
    %v90 = vrot.slane %v85, %v89
    %v100 = vlaneseq
    %v101 = vand.u32 %v100, 127
    %v102 = vlaneseq
    %v103 = vshrl.u32 %v102, 7
    %v104 = vsub.s32 %v101, %v103
    %v105 = vrot.slane %v75, %v104
    %v106 = vadd.s32 %v101, 4294967288
    %v107 = vlaneseq
    %v108 = vshrl.u32 %v107, 7
    %v109 = vsub.s32 %v106, %v108
    %v110 = vrot.slane %v76, %v109
    %vm111 = vcmask 130112
    %v112 = vsel %vm111, %v110, %v105
    %v113 = vlaneseq
    %v114 = vshrl.u32 %v113, 7
    %v115 = vsub.s32 %v101, %v114
    %v116 = vrot.slane %v77, %v115
    %v117 = vlaneseq
    %v118 = vshrl.u32 %v117, 7
    %v119 = vsub.s32 %v106, %v118
    %v120 = vrot.slane %v78, %v119
    %v121 = vsel %vm111, %v120, %v116
    %v122 = vlaneseq
    %v123 = vshrl.u32 %v122, 7
    %v124 = vsub.s32 %v101, %v123
    %v125 = vrot.slane %v79, %v124
    %v126 = vlaneseq
    %v127 = vshrl.u32 %v126, 7
    %v128 = vsub.s32 %v106, %v127
    %v129 = vrot.slane %v80, %v128
    %v130 = vsel %vm111, %v129, %v125
    %v131 = vlaneseq
    %v132 = vshrl.u32 %v131, 7
    %v133 = vsub.s32 %v101, %v132
    %v134 = vrot.slane %v81, %v133
    %v135 = vlaneseq
    %v136 = vshrl.u32 %v135, 7
    %v137 = vsub.s32 %v106, %v136
    %v138 = vrot.slane %v82, %v137
    %v139 = vsel %vm111, %v138, %v134
    %vm140 = vcmask 1041409
    %v141 = vsel %vm140, %v121, %v112
    %vm142 = vcmask 1042434
    %v143 = vsel %vm142, %v130, %v141
    %vm144 = vcmask 1043459
    %v145 = vsel %vm144, %v139, %v143
    %vm146 = vcmask 130048
    %v147 = vsel %vm146, %v145, 0
    %149 = vmatprep.subr.mxu0 0.0
    %150 = vmatpush1.msra.mxu0 %v83
    %151 = vmatprep.subr.mxu0 0.0
    %152 = vmatpush1.msra.mxu0 %v84
    %153 = vmatprep.subr.mxu0 0.0
    %154 = vmatpush1.msra.mxu0 0.0
    %155 = vmatprep.subr.mxu0 0.0
    %156 = vmatpush1.msra.mxu0 0.0
    %157 = vmatprep.subr.mxu0 0.0
    %158 = vmatpush1.msra.mxu0 0.0
    %159 = vmatprep.subr.mxu0 0.0
    %160 = vmatpush1.msra.mxu0 0.0
    %161 = vmatprep.subr.mxu0 0.0
    %162 = vmatpush1.msra.mxu0 0.0
    %163 = vmatprep.subr.mxu0 0.0
    %164 = vmatpush1.msra.mxu0 0.0
    %165 = vmatprep.subr.mxu0 0.0
    %166 = vmatpush1.msra.mxu0 0.0
    %167 = vmatprep.subr.mxu0 0.0
    %168 = vmatpush1.msra.mxu0 0.0
    %169 = vmatprep.subr.mxu0 0.0
    %170 = vmatpush1.msra.mxu0 0.0
    %171 = vmatprep.subr.mxu0 0.0
    %172 = vmatpush1.msra.mxu0 0.0
    %173 = vmatprep.subr.mxu0 0.0
    %174 = vmatpush1.msra.mxu0 0.0
    %175 = vmatprep.subr.mxu0 0.0
    %176 = vmatpush1.msra.mxu0 0.0
    %177 = vmatprep.subr.mxu0 0.0
    %178 = vmatpush1.msra.mxu0 0.0
    %179 = vmatprep.subr.mxu0 0.0
    %180 = vmatpush1.msra.mxu0 0.0
    %181 = vmatprep.subr.mxu0 0.0
    %182 = vmatpush1.msra.mxu0 0.0
    %183 = vmatprep.subr.mxu0 0.0
    %184 = vmatpush1.msra.mxu0 0.0
    %185 = vmatprep.subr.mxu0 0.0
    %186 = vmatpush1.msra.mxu0 0.0
    %187 = vmatprep.subr.mxu0 0.0
    %188 = vmatpush1.msra.mxu0 0.0
    %189 = vmatprep.subr.mxu0 0.0
    %190 = vmatpush1.msra.mxu0 0.0
    %191 = vmatprep.subr.mxu0 0.0
    %192 = vmatpush1.msra.mxu0 0.0
    %193 = vmatprep.subr.mxu0 0.0
    %194 = vmatpush1.msra.mxu0 0.0
    %195 = vmatprep.subr.mxu0 0.0
    %196 = vmatpush1.msra.mxu0 0.0
    %197 = vmatprep.subr.mxu0 0.0
    %198 = vmatpush1.msra.mxu0 0.0
    %199 = vmatprep.subr.mxu0 0.0
    %200 = vmatpush1.msra.mxu0 0.0
    %201 = vmatprep.subr.mxu0 0.0
    %202 = vmatpush1.msra.mxu0 0.0
    %203 = vmatprep.subr.mxu0 0.0
    %204 = vmatpush1.msra.mxu0 0.0
    %205 = vmatprep.subr.mxu0 0.0
    %206 = vmatpush1.msra.mxu0 0.0
    %207 = vmatprep.subr.mxu0 0.0
    %208 = vmatpush1.msra.mxu0 0.0
    %209 = vmatprep.subr.mxu0 0.0
    %210 = vmatpush1.msra.mxu0 0.0
    %211 = vmatprep.subr.mxu0 0.0
    %212 = vmatpush1.msra.mxu0 0.0
    %213 = vmatprep.mubr.f32.mxu0 0.0
    %214 = vmatmul.mubr.f32.gmra.mrb[0].mxu0 %v147
    %v215 = vpop.f32.mrb[0].mxu0
    %v216 = vadd.f32 %v90, %v215
    %v217 = vpop.f32.mrb[0].mxu0
    %218 = vdwg.mxu0
    %v219 = vmax.f32 %v216, 0.0
    %v220 = vld [vmem:[%s3] sm:$0xf]
    %v221 = vld [vmem:[%s4] sm:$0x1]
    %v223 = vlaneseq
    %v224 = vshrl.u32 %v223, 7
    %v225 = vsub.s32 0, %v224
    %v226 = vrot.slane %v221, %v225
    %vm228 = vcmask 31744
    %v230 = vsel %vm228, %v219, 0
    %vm232 = vcmask 1043456
    %v234 = vsel %vm232, %v220, 0
    %236 = vmatprep.subr.mxu0 0.0
    %237 = vmatpush1.msra.mxu0 %v234
    %238 = vmatprep.subr.mxu0 0.0
    %239 = vmatpush1.msra.mxu0 0.0
    %240 = vmatprep.subr.mxu0 0.0
    %241 = vmatpush1.msra.mxu0 0.0
    %242 = vmatprep.subr.mxu0 0.0
    %243 = vmatpush1.msra.mxu0 0.0
    %244 = vmatprep.subr.mxu0 0.0
    %245 = vmatpush1.msra.mxu0 0.0
    %246 = vmatprep.subr.mxu0 0.0
    %247 = vmatpush1.msra.mxu0 0.0
    %248 = vmatprep.subr.mxu0 0.0
    %249 = vmatpush1.msra.mxu0 0.0
    %250 = vmatprep.subr.mxu0 0.0
    %251 = vmatpush1.msra.mxu0 0.0
    %252 = vmatprep.subr.mxu0 0.0
    %253 = vmatpush1.msra.mxu0 0.0
    %254 = vmatprep.subr.mxu0 0.0
    %255 = vmatpush1.msra.mxu0 0.0
    %256 = vmatprep.subr.mxu0 0.0
    %257 = vmatpush1.msra.mxu0 0.0
    %258 = vmatprep.subr.mxu0 0.0
    %259 = vmatpush1.msra.mxu0 0.0
    %260 = vmatprep.subr.mxu0 0.0
    %261 = vmatpush1.msra.mxu0 0.0
    %262 = vmatprep.subr.mxu0 0.0
    %263 = vmatpush1.msra.mxu0 0.0
    %264 = vmatprep.subr.mxu0 0.0
    %265 = vmatpush1.msra.mxu0 0.0
    %266 = vmatprep.subr.mxu0 0.0
    %267 = vmatpush1.msra.mxu0 0.0
    %268 = vmatprep.subr.mxu0 0.0
    %269 = vmatpush1.msra.mxu0 0.0
    %270 = vmatprep.subr.mxu0 0.0
    %271 = vmatpush1.msra.mxu0 0.0
    %272 = vmatprep.subr.mxu0 0.0
    %273 = vmatpush1.msra.mxu0 0.0
    %274 = vmatprep.subr.mxu0 0.0
    %275 = vmatpush1.msra.mxu0 0.0
    %276 = vmatprep.subr.mxu0 0.0
    %277 = vmatpush1.msra.mxu0 0.0
    %278 = vmatprep.subr.mxu0 0.0
    %279 = vmatpush1.msra.mxu0 0.0
    %280 = vmatprep.subr.mxu0 0.0
    %281 = vmatpush1.msra.mxu0 0.0
    %282 = vmatprep.subr.mxu0 0.0
    %283 = vmatpush1.msra.mxu0 0.0
    %284 = vmatprep.subr.mxu0 0.0
    %285 = vmatpush1.msra.mxu0 0.0
    %286 = vmatprep.subr.mxu0 0.0
    %287 = vmatpush1.msra.mxu0 0.0
    %288 = vmatprep.subr.mxu0 0.0
    %289 = vmatpush1.msra.mxu0 0.0
    %290 = vmatprep.subr.mxu0 0.0
    %291 = vmatpush1.msra.mxu0 0.0
    %292 = vmatprep.subr.mxu0 0.0
    %293 = vmatpush1.msra.mxu0 0.0
    %294 = vmatprep.subr.mxu0 0.0
    %295 = vmatpush1.msra.mxu0 0.0
    %296 = vmatprep.subr.mxu0 0.0
    %297 = vmatpush1.msra.mxu0 0.0
    %298 = vmatprep.subr.mxu0 0.0
    %299 = vmatpush1.msra.mxu0 0.0
    %300 = vmatprep.mubr.f32.mxu0 0.0
    %301 = vmatmul.mubr.f32.gmra.mrb[0].mxu0 %v230
    %v302 = vpop.f32.mrb[0].mxu0
    %v303 = vadd.f32 %v226, %v302
    %v304 = vpop.f32.mrb[0].mxu0
    %305 = vdwg.mxu0
    %v306 = vxor.u32 %v303, 2147483648
    %v307 = vmul.f32 %v306, 1.442695
    %v308 = vpow.pop %v307
    %v309 = vadd.f32 %v308, 1.0
    %v310 = vrcp.pop %v309
    %v311 = vmul.f32 1.0, %v310
    %v312 = vlaneseq
    %v313 = vshrl.u32 %v312, 7
    %v314 = vsub.s32 0, %v313
    %v315 = vrot.slane %v311, %v314
    %317 = vbcast.lane.b32.xlu0 %v315, 256
    %v318 = vpop.permute.xlu0 %317
    %s320 = sor.u32 256, 8
    %321 = vbcast.lane.b32.xlu0 %v315, %s320
    %v322 = vpop.permute.xlu0 %321
    %v323 = vlaneseq
    %v324 = vshrl.u32 %v323, 7
    %v325 = vsub.s32 1, %v324
    %v326 = vrot.slane %v311, %v325
    %328 = vbcast.lane.b32.xlu0 %v326, 256
    %v329 = vpop.permute.xlu0 %328
    %s331 = sor.u32 256, 8
    %332 = vbcast.lane.b32.xlu0 %v326, %s331
    %v333 = vpop.permute.xlu0 %332
    %v334 = vlaneseq
    %v335 = vshrl.u32 %v334, 7
    %v336 = vsub.s32 2, %v335
    %v337 = vrot.slane %v311, %v336
    %339 = vbcast.lane.b32.xlu0 %v337, 256
    %v340 = vpop.permute.xlu0 %339
    %s342 = sor.u32 256, 8
    %343 = vbcast.lane.b32.xlu0 %v337, %s342
    %v344 = vpop.permute.xlu0 %343
    %v345 = vlaneseq
    %v346 = vshrl.u32 %v345, 7
    %v347 = vsub.s32 3, %v346
    %v348 = vrot.slane %v311, %v347
    %350 = vbcast.lane.b32.xlu0 %v348, 256
    %v351 = vpop.permute.xlu0 %350
    %s353 = sor.u32 256, 8
    %354 = vbcast.lane.b32.xlu0 %v348, %s353
    %v355 = vpop.permute.xlu0 %354
    %v356 = vmul.f32 %v35, %v318
    %v357 = vmul.f32 %v36, %v318
    %v358 = vmul.f32 %v37, %v322
    %v359 = vmul.f32 %v38, %v322
    %v360 = vmul.f32 %v39, %v329
    %v361 = vmul.f32 %v40, %v329
    %v362 = vmul.f32 %v41, %v333
    %v363 = vmul.f32 %v42, %v333
    %v364 = vmul.f32 %v43, %v340
    %v365 = vmul.f32 %v44, %v340
    %v366 = vmul.f32 %v45, %v344
    %v367 = vmul.f32 %v46, %v344
    %v368 = vmul.f32 %v47, %v351
    %v369 = vmul.f32 %v48, %v351
    %v370 = vmul.f32 %v49, %v355
    %v371 = vmul.f32 %v50, %v355
    %372 = vst [vmem:[#allocation5] sm:$0xff] %v356
    %373 = vst [vmem:[#allocation5 + $0x8] sm:$0xff] %v357
    %374 = vst [vmem:[#allocation5 + $0x10] sm:$0xff] %v358
    %375 = vst [vmem:[#allocation5 + $0x18] sm:$0xff] %v359
    %376 = vst [vmem:[#allocation5 + $0x20] sm:$0xff] %v360
    %377 = vst [vmem:[#allocation5 + $0x28] sm:$0xff] %v361
    %378 = vst [vmem:[#allocation5 + $0x30] sm:$0xff] %v362
    %379 = vst [vmem:[#allocation5 + $0x38] sm:$0xff] %v363
    %380 = vst [vmem:[#allocation5 + $0x40] sm:$0xff] %v364
    %381 = vst [vmem:[#allocation5 + $0x48] sm:$0xff] %v365
    %382 = vst [vmem:[#allocation5 + $0x50] sm:$0xff] %v366
    %383 = vst [vmem:[#allocation5 + $0x58] sm:$0xff] %v367
    %384 = vst [vmem:[#allocation5 + $0x60] sm:$0xff] %v368
    %385 = vst [vmem:[#allocation5 + $0x68] sm:$0xff] %v369
    %386 = vst [vmem:[#allocation5 + $0x70] sm:$0xff] %v370
    %387 = vst [vmem:[#allocation5 + $0x78] sm:$0xff] %v371
    // Predicated region
    $region26: #{tpu_custom_call.1} parent=1 // pred_check
      _
    $region27: #{tpu_custom_call.1} parent=1 // pred_check_branch
      %389 = sbr.rel (0) target = $region29
    $region28: #{tpu_custom_call.1} parent=1 // pred_region
      %s391 = ssub.s32 2048, 2048
      %392 = vsyncadd [#allocation4], %s391
      %s393 = sshll.u32 [#allocation5], 4
      %s394 = int_to_ptr.vmem [resolvable:$true] %s393
      %399 = dma.vmem_to_hbm [thread:$0]  %s394, 2048, %s5, [#allocation4], 256, 256, 16
    $region29: #{tpu_custom_call.1} parent=1 // pred_fallthru
      _
    // Predicated region
    $region30: #{tpu_custom_call.1} parent=1 // pred_check
      _
    $region31: #{tpu_custom_call.1} parent=1 // pred_check_branch
      %401 = sbr.rel (0) target = $region33
    $region32: #{tpu_custom_call.1} parent=1 // pred_region
      %402 = dma.done [#allocation4], 2048
    $region33: #{tpu_custom_call.1} parent=1 // pred_fallthru
      _
    %403 = vsyncpa [#allocation3], 1
    %404 = vsyncpa [#allocation4], 1

</llo_original>
